<compile_context>
chip_gen: v6e
topology: v6e:2x2x1
jax: 0.10.0
libtpu: 0.0.40
codegen_flags: <defaults>
</compile_context>

<pallas_src>
import functools

import jax
import jax.numpy as jnp
from jax.experimental import pallas as pl
from jax.experimental.pallas import tpu as pltpu

LANE = 128
SUBLANE = 8


def _round_up(x, m):
    return (x + m - 1) // m * m


def mlp_encoder_kernel(x_ref,
                       w1_ref, b1_ref, w2_ref, b2_ref,   # encoder MLP
                       w3_ref, b3_ref, w4_ref, b4_ref,   # decoder MLP
                       zf2_ref, xhat_ref):
    # x / weights are bf16 (MXU-native); accumulate in f32; epilogue in f32.
    x = x_ref[...]

    # encoder.fc1 + relu
    z1 = jnp.dot(x, w1_ref[...], preferred_element_type=jnp.float32) + b1_ref[...]
    z1 = jnp.maximum(z1, 0.0)

    # encoder.fc2 (no activation) -> Z_F2
    z2 = jnp.dot(z1.astype(jnp.bfloat16), w2_ref[...],
                 preferred_element_type=jnp.float32) + b2_ref[...]

    # decoder.fc1 + relu
    d1 = jnp.dot(z2.astype(jnp.bfloat16), w3_ref[...],
                 preferred_element_type=jnp.float32) + b3_ref[...]
    d1 = jnp.maximum(d1, 0.0)

    # decoder.fc2 (no activation) -> X_hat2
    xhat = jnp.dot(d1.astype(jnp.bfloat16), w4_ref[...],
                   preferred_element_type=jnp.float32) + b4_ref[...]

    zf2_ref[...] = z2.astype(zf2_ref.dtype)
    xhat_ref[...] = xhat.astype(xhat_ref.dtype)


@functools.partial(jax.jit, static_argnames=("tile_n",))
def mlp_encoder_forward(x, params, *, tile_n=None):
    """x: (N, n_fts) float32; params: dict of (in, out) weights and (1, out) biases."""
    N, n_fts = x.shape
    n_hid1 = params["w1"].shape[1]
    n_hid2 = params["w2"].shape[1]

    # Lane-dense padded widths (multiples of 128).
    f_p = _round_up(n_fts, LANE)
    h1_p = _round_up(n_hid1, LANE)
    h2_p = _round_up(n_hid2, LANE)

    # Row tile: default 1024 rows (>=85% of HBM roofline per measured data),
    # clamped/padded so the grid divides evenly.
    if tile_n is None:
        tile_n = 1024
    tile_n = max(SUBLANE, _round_up(min(tile_n, _round_up(N, SUBLANE)), SUBLANE))
    n_p = _round_up(max(N, tile_n), tile_n)
    grid = (n_p // tile_n,)

    def pad2(a, rows, cols, dtype):
        a = a.astype(dtype)
        return jnp.pad(a, ((0, rows - a.shape[0]), (0, cols - a.shape[1])))

    # Zero padding is numerically exact: padded lanes/rows contribute 0 to every
    # accumulation and padded outputs are sliced off below.
    x_p = pad2(x, n_p, f_p, jnp.bfloat16)
    w1_p = pad2(params["w1"], f_p, h1_p, jnp.bfloat16)
    w2_p = pad2(params["w2"], h1_p, h2_p, jnp.bfloat16)
    w3_p = pad2(params["w3"], h2_p, h1_p, jnp.bfloat16)
    w4_p = pad2(params["w4"], h1_p, f_p, jnp.bfloat16)
    b1_p = pad2(params["b1"], 1, h1_p, jnp.float32)
    b2_p = pad2(params["b2"], 1, h2_p, jnp.float32)
    b3_p = pad2(params["b3"], 1, h1_p, jnp.float32)
    b4_p = pad2(params["b4"], 1, f_p, jnp.float32)

    row_spec = lambda cols: pl.BlockSpec((tile_n, cols), lambda i: (i, 0))
    # Weights / biases: constant block index -> stay resident in VMEM across steps.
    full_spec = lambda rows, cols: pl.BlockSpec((rows, cols), lambda i: (0, 0))

    out_shapes = (
        jax.ShapeDtypeStruct((n_p, h2_p), jnp.float32),  # Z_F2 (padded)
        jax.ShapeDtypeStruct((n_p, f_p), jnp.float32),   # X_hat2 (padded)
    )

    flops = 2 * n_p * (f_p * h1_p + h1_p * h2_p + h2_p * h1_p + h1_p * f_p)
    bytes_accessed = (
        n_p * f_p * 2                                               # x (bf16)
        + (f_p * h1_p + h1_p * h2_p + h2_p * h1_p + h1_p * f_p) * 2  # weights (bf16)
        + (h1_p + h2_p + h1_p + f_p) * 4                            # biases (f32)
        + (n_p * h2_p + n_p * f_p) * 4                              # outputs (f32)
    )

    zf2_p, xhat_p = pl.pallas_call(
        mlp_encoder_kernel,
        out_shape=out_shapes,
        grid=grid,
        in_specs=[
            row_spec(f_p),                # x tile
            full_spec(f_p, h1_p), full_spec(1, h1_p),   # w1, b1
            full_spec(h1_p, h2_p), full_spec(1, h2_p),  # w2, b2
            full_spec(h2_p, h1_p), full_spec(1, h1_p),  # w3, b3
            full_spec(h1_p, f_p), full_spec(1, f_p),    # w4, b4
        ],
        out_specs=(row_spec(h2_p), row_spec(f_p)),
        compiler_params=pltpu.CompilerParams(
            dimension_semantics=("parallel",),
            vmem_limit_bytes=48 * 1024 * 1024,
        ),
        cost_estimate=pl.CostEstimate(
            flops=flops, transcendentals=0, bytes_accessed=bytes_accessed),
    )(x_p, w1_p, b1_p, w2_p, b2_p, w3_p, b3_p, w4_p, b4_p)

    return zf2_p[:N, :n_hid2], xhat_p[:N, :n_fts]


def _init_linear(key, n_in, n_out):
    """PyTorch nn.Linear-style uniform(-1/sqrt(in), 1/sqrt(in)) init.

    Returns weight already transposed to (in, out) and bias as (1, out)."""
    kw, kb = jax.random.split(key)
    bound = 1.0 / jnp.sqrt(jnp.float32(n_in))
    w = jax.random.uniform(kw, (n_in, n_out), jnp.float32, -bound, bound)
    b = jax.random.uniform(kb, (1, n_out), jnp.float32, -bound, bound)
    return w, b


def make_params(key, n_fts, n_hid1, n_hid2):
    k1, k2, k3, k4 = jax.random.split(key, 4)
    w1, b1 = _init_linear(k1, n_fts, n_hid1)    # encoder.fc1
    w2, b2 = _init_linear(k2, n_hid1, n_hid2)   # encoder.fc2
    w3, b3 = _init_linear(k3, n_hid2, n_hid1)   # decoder.fc1
    w4, b4 = _init_linear(k4, n_hid1, n_fts)    # decoder.fc2
    return dict(w1=w1, b1=b1, w2=w2, b2=b2, w3=w3, b3=b3, w4=w4, b4=b4)


def reference_forward_bf16(x, p):
    """Mirrors the kernel numerics: bf16-rounded operands, (near-)f32 accumulation."""
    r = lambda a: a.astype(jnp.bfloat16).astype(jnp.float32)
    hp = jax.lax.Precision.HIGHEST
    z1 = jnp.maximum(jnp.dot(r(x), r(p["w1"]), precision=hp) + p["b1"], 0.0)
    z2 = jnp.dot(r(z1), r(p["w2"]), precision=hp) + p["b2"]
    d1 = jnp.maximum(jnp.dot(r(z2), r(p["w3"]), precision=hp) + p["b3"], 0.0)
    xhat = jnp.dot(r(d1), r(p["w4"]), precision=hp) + p["b4"]
    return z2, xhat


def reference_forward_f32(x, p):
    hp = jax.lax.Precision.HIGHEST
    z1 = jnp.maximum(jnp.dot(x, p["w1"], precision=hp) + p["b1"], 0.0)
    z2 = jnp.dot(z1, p["w2"], precision=hp) + p["b2"]
    d1 = jnp.maximum(jnp.dot(z2, p["w3"], precision=hp) + p["b3"], 0.0)
    xhat = jnp.dot(d1, p["w4"], precision=hp) + p["b4"]
    return z2, xhat


if __name__ == "__main__":
    key = jax.random.PRNGKey(0)
    kx, kp = jax.random.split(key)

    # Small, deliberately non-aligned shapes (exercise padding + multi-step grid).
    N, n_fts, n_hid1, n_hid2 = 300, 33, 70, 18

    x = jax.random.normal(kx, (N, n_fts), jnp.float32)
    params = make_params(kp, n_fts, n_hid1, n_hid2)

    # tile_n=128 -> padded N=384, grid=(3,): exercises the row-tiled pipeline.
    z_f2, x_hat2 = mlp_encoder_forward(x, params, tile_n=128)
    z_f2 = jax.block_until_ready(z_f2)
    x_hat2 = jax.block_until_ready(x_hat2)

    assert z_f2.shape == (N, n_hid2) and x_hat2.shape == (N, n_fts)

    # Tight check against a reference that mirrors the bf16-operand / f32-acc numerics.
    z_bf, xh_bf = reference_forward_bf16(x, params)
    assert jnp.allclose(z_f2, z_bf, atol=5e-3, rtol=5e-3)
    assert jnp.allclose(x_hat2, xh_bf, atol=5e-3, rtol=5e-3)

    # Loose sanity check against the full-f32 reference (bf16 operand rounding only).
    z_ref, x_ref = reference_forward_f32(x, params)
    assert jnp.allclose(z_f2, z_ref, atol=1e-1, rtol=1e-1)
    assert jnp.allclose(x_hat2, x_ref, atol=1e-1, rtol=1e-1)

    print("KERNEL_OK")
</pallas_src>

<mosaic_0001>
module attributes {stable_mosaic.version = 11 : i64} {
  func.func @mlp_encoder_kernel(%arg0: i32, %arg1: memref<128x128xbf16, #tpu.memory_space<vmem>>, %arg2: memref<128x128xbf16, #tpu.memory_space<vmem>>, %arg3: memref<1x128xf32, #tpu.memory_space<vmem>>, %arg4: memref<128x128xbf16, #tpu.memory_space<vmem>>, %arg5: memref<1x128xf32, #tpu.memory_space<vmem>>, %arg6: memref<128x128xbf16, #tpu.memory_space<vmem>>, %arg7: memref<1x128xf32, #tpu.memory_space<vmem>>, %arg8: memref<128x128xbf16, #tpu.memory_space<vmem>>, %arg9: memref<1x128xf32, #tpu.memory_space<vmem>>, %arg10: memref<128x128xf32, #tpu.memory_space<vmem>>, %arg11: memref<128x128xf32, #tpu.memory_space<vmem>>) attributes {dimension_semantics = [#tpu.dimension_semantics<parallel>], iteration_bounds = array<i64: 3>, scalar_prefetch = 0 : i64, scratch_operands = 0 : i64, tpu.core_type = #tpu.core_type<tc>, window_params = [{transform_indices = @transform_0, window_bounds = array<i64: 128, 128>}, {pipeline_mode = #tpu.pipeline_mode<synchronous>, transform_indices = @transform_1, window_bounds = array<i64: 128, 128>}, {pipeline_mode = #tpu.pipeline_mode<synchronous>, transform_indices = @transform_2, window_bounds = array<i64: 1, 128>}, {pipeline_mode = #tpu.pipeline_mode<synchronous>, transform_indices = @transform_3, window_bounds = array<i64: 128, 128>}, {pipeline_mode = #tpu.pipeline_mode<synchronous>, transform_indices = @transform_4, window_bounds = array<i64: 1, 128>}, {pipeline_mode = #tpu.pipeline_mode<synchronous>, transform_indices = @transform_5, window_bounds = array<i64: 128, 128>}, {pipeline_mode = #tpu.pipeline_mode<synchronous>, transform_indices = @transform_6, window_bounds = array<i64: 1, 128>}, {pipeline_mode = #tpu.pipeline_mode<synchronous>, transform_indices = @transform_7, window_bounds = array<i64: 128, 128>}, {pipeline_mode = #tpu.pipeline_mode<synchronous>, transform_indices = @transform_8, window_bounds = array<i64: 1, 128>}, {transform_indices = @transform_9, window_bounds = array<i64: 128, 128>}, {transform_indices = @transform_10, window_bounds = array<i64: 128, 128>}]} {
    %c0 = arith.constant 0 : index
    %c0_0 = arith.constant 0 : index
    %0 = vector.load %arg1[%c0, %c0_0] : memref<128x128xbf16, #tpu.memory_space<vmem>>, vector<128x128xbf16>
    %c0_1 = arith.constant 0 : index
    %c0_2 = arith.constant 0 : index
    %1 = vector.load %arg2[%c0_1, %c0_2] : memref<128x128xbf16, #tpu.memory_space<vmem>>, vector<128x128xbf16>
    %cst = arith.constant dense<0.000000e+00> : vector<128x128xf32>
    %2 = tpu.matmul %0, %1, %cst {dimension_numbers = #tpu.dot_dimension_numbers<[1], [0], [0], [1], [0, 0, 1, 1], [], []>} : vector<128x128xbf16>, vector<128x128xbf16>, vector<128x128xf32> -> vector<128x128xf32>
    %c0_3 = arith.constant 0 : index
    %c0_4 = arith.constant 0 : index
    %3 = vector.load %arg3[%c0_3, %c0_4] : memref<1x128xf32, #tpu.memory_space<vmem>>, vector<1x128xf32>
    %4 = vector.broadcast %3 : vector<1x128xf32> to vector<128x128xf32>
    %5 = arith.addf %2, %4 : vector<128x128xf32>
    %cst_5 = arith.constant 0.000000e+00 : f32
    %6 = vector.broadcast %cst_5 : f32 to vector<128x128xf32>
    %7 = arith.maximumf %5, %6 : vector<128x128xf32>
    %8 = arith.truncf %7 : vector<128x128xf32> to vector<128x128xbf16>
    %c0_6 = arith.constant 0 : index
    %c0_7 = arith.constant 0 : index
    %9 = vector.load %arg4[%c0_6, %c0_7] : memref<128x128xbf16, #tpu.memory_space<vmem>>, vector<128x128xbf16>
    %cst_8 = arith.constant dense<0.000000e+00> : vector<128x128xf32>
    %10 = tpu.matmul %8, %9, %cst_8 {dimension_numbers = #tpu.dot_dimension_numbers<[1], [0], [0], [1], [0, 0, 1, 1], [], []>} : vector<128x128xbf16>, vector<128x128xbf16>, vector<128x128xf32> -> vector<128x128xf32>
    %c0_9 = arith.constant 0 : index
    %c0_10 = arith.constant 0 : index
    %11 = vector.load %arg5[%c0_9, %c0_10] : memref<1x128xf32, #tpu.memory_space<vmem>>, vector<1x128xf32>
    %12 = vector.broadcast %11 : vector<1x128xf32> to vector<128x128xf32>
    %13 = arith.addf %10, %12 : vector<128x128xf32>
    %14 = arith.truncf %13 : vector<128x128xf32> to vector<128x128xbf16>
    %c0_11 = arith.constant 0 : index
    %c0_12 = arith.constant 0 : index
    %15 = vector.load %arg6[%c0_11, %c0_12] : memref<128x128xbf16, #tpu.memory_space<vmem>>, vector<128x128xbf16>
    %cst_13 = arith.constant dense<0.000000e+00> : vector<128x128xf32>
    %16 = tpu.matmul %14, %15, %cst_13 {dimension_numbers = #tpu.dot_dimension_numbers<[1], [0], [0], [1], [0, 0, 1, 1], [], []>} : vector<128x128xbf16>, vector<128x128xbf16>, vector<128x128xf32> -> vector<128x128xf32>
    %c0_14 = arith.constant 0 : index
    %c0_15 = arith.constant 0 : index
    %17 = vector.load %arg7[%c0_14, %c0_15] : memref<1x128xf32, #tpu.memory_space<vmem>>, vector<1x128xf32>
    %18 = vector.broadcast %17 : vector<1x128xf32> to vector<128x128xf32>
    %19 = arith.addf %16, %18 : vector<128x128xf32>
    %cst_16 = arith.constant 0.000000e+00 : f32
    %20 = vector.broadcast %cst_16 : f32 to vector<128x128xf32>
    %21 = arith.maximumf %19, %20 : vector<128x128xf32>
    %22 = arith.truncf %21 : vector<128x128xf32> to vector<128x128xbf16>
    %c0_17 = arith.constant 0 : index
    %c0_18 = arith.constant 0 : index
    %23 = vector.load %arg8[%c0_17, %c0_18] : memref<128x128xbf16, #tpu.memory_space<vmem>>, vector<128x128xbf16>
    %cst_19 = arith.constant dense<0.000000e+00> : vector<128x128xf32>
    %24 = tpu.matmul %22, %23, %cst_19 {dimension_numbers = #tpu.dot_dimension_numbers<[1], [0], [0], [1], [0, 0, 1, 1], [], []>} : vector<128x128xbf16>, vector<128x128xbf16>, vector<128x128xf32> -> vector<128x128xf32>
    %c0_20 = arith.constant 0 : index
    %c0_21 = arith.constant 0 : index
    %25 = vector.load %arg9[%c0_20, %c0_21] : memref<1x128xf32, #tpu.memory_space<vmem>>, vector<1x128xf32>
    %26 = vector.broadcast %25 : vector<1x128xf32> to vector<128x128xf32>
    %27 = arith.addf %24, %26 : vector<128x128xf32>
    %c0_22 = arith.constant 0 : index
    %c0_23 = arith.constant 0 : index
    %28 = vector.load %arg10[%c0_22, %c0_23] : memref<128x128xf32, #tpu.memory_space<vmem>>, vector<128x128xf32>
    tpu.vector_store %arg10[%c0_22, %c0_23], %13 {strides = array<i32>} : memref<128x128xf32, #tpu.memory_space<vmem>>, vector<128x128xf32>,
    %c0_24 = arith.constant 0 : index
    %c0_25 = arith.constant 0 : index
    %29 = vector.load %arg11[%c0_24, %c0_25] : memref<128x128xf32, #tpu.memory_space<vmem>>, vector<128x128xf32>
    tpu.vector_store %arg11[%c0_24, %c0_25], %27 {strides = array<i32>} : memref<128x128xf32, #tpu.memory_space<vmem>>, vector<128x128xf32>,
    return
  }
  func.func @transform_0(%arg0: i32) -> (i32, i32) {
    %c0_i32 = arith.constant 0 : i32
    %c0_i32_0 = arith.constant 0 : i32
    return %arg0, %c0_i32 : i32, i32
  }
  func.func @transform_1(%arg0: i32) -> (i32, i32) {
    %c0_i32 = arith.constant 0 : i32
    %c0_i32_0 = arith.constant 0 : i32
    %c0_i32_1 = arith.constant 0 : i32
    return %c0_i32, %c0_i32_0 : i32, i32
  }
  func.func @transform_2(%arg0: i32) -> (i32, i32) {
    %c0_i32 = arith.constant 0 : i32
    %c0_i32_0 = arith.constant 0 : i32
    %c0_i32_1 = arith.constant 0 : i32
    return %c0_i32, %c0_i32_0 : i32, i32
  }
  func.func @transform_3(%arg0: i32) -> (i32, i32) {
    %c0_i32 = arith.constant 0 : i32
    %c0_i32_0 = arith.constant 0 : i32
    %c0_i32_1 = arith.constant 0 : i32
    return %c0_i32, %c0_i32_0 : i32, i32
  }
  func.func @transform_4(%arg0: i32) -> (i32, i32) {
    %c0_i32 = arith.constant 0 : i32
    %c0_i32_0 = arith.constant 0 : i32
    %c0_i32_1 = arith.constant 0 : i32
    return %c0_i32, %c0_i32_0 : i32, i32
  }
  func.func @transform_5(%arg0: i32) -> (i32, i32) {
    %c0_i32 = arith.constant 0 : i32
    %c0_i32_0 = arith.constant 0 : i32
    %c0_i32_1 = arith.constant 0 : i32
    return %c0_i32, %c0_i32_0 : i32, i32
  }
  func.func @transform_6(%arg0: i32) -> (i32, i32) {
    %c0_i32 = arith.constant 0 : i32
    %c0_i32_0 = arith.constant 0 : i32
    %c0_i32_1 = arith.constant 0 : i32
    return %c0_i32, %c0_i32_0 : i32, i32
  }
  func.func @transform_7(%arg0: i32) -> (i32, i32) {
    %c0_i32 = arith.constant 0 : i32
    %c0_i32_0 = arith.constant 0 : i32
    %c0_i32_1 = arith.constant 0 : i32
    return %c0_i32, %c0_i32_0 : i32, i32
  }
  func.func @transform_8(%arg0: i32) -> (i32, i32) {
    %c0_i32 = arith.constant 0 : i32
    %c0_i32_0 = arith.constant 0 : i32
    %c0_i32_1 = arith.constant 0 : i32
    return %c0_i32, %c0_i32_0 : i32, i32
  }
  func.func @transform_9(%arg0: i32) -> (i32, i32) {
    %c0_i32 = arith.constant 0 : i32
    %c0_i32_0 = arith.constant 0 : i32
    return %arg0, %c0_i32 : i32, i32
  }
  func.func @transform_10(%arg0: i32) -> (i32, i32) {
    %c0_i32 = arith.constant 0 : i32
    %c0_i32_0 = arith.constant 0 : i32
    return %arg0, %c0_i32 : i32, i32
  }
}

</mosaic_0001>

<llo_original>
// kernel: mlp_encoder_forward.1
$region0: #{mlp_encoder_forward.1}
  #allocation0 [shape = 'u32[]', space=smem, size = 0x4, offset = 0x4, fixed_abs, tag = 'smem constant byte address 0x4 - core index']
  #allocation1 [shape = 'u32[144,128]{1,0:T(1,128)}', space=vmem, size = 0x12000, scoped, tag = 'internal scratch']
  %s0 = inlined_call_operand.vmem [shape: bf16[384,128], index: 0, kind: input, shape index: {}]
  %s1 = inlined_call_operand.vmem [shape: bf16[128,128], index: 1, kind: input, shape index: {}]
  %s2 = inlined_call_operand.vmem [shape: f32[1,128], index: 2, kind: input, shape index: {}]
  %s3 = inlined_call_operand.vmem [shape: bf16[128,128], index: 3, kind: input, shape index: {}]
  %s4 = inlined_call_operand.vmem [shape: f32[1,128], index: 4, kind: input, shape index: {}]
  %s5 = inlined_call_operand.vmem [shape: bf16[128,128], index: 5, kind: input, shape index: {}]
  %s6 = inlined_call_operand.vmem [shape: f32[1,128], index: 6, kind: input, shape index: {}]
  %s7 = inlined_call_operand.vmem [shape: bf16[128,128], index: 7, kind: input, shape index: {}]
  %s8 = inlined_call_operand.vmem [shape: f32[1,128], index: 8, kind: input, shape index: {}]
  %s9 = inlined_call_operand.vmem [shape: f32[384,128], index: 9, kind: output, shape index: {0}]
  %s10 = inlined_call_operand.vmem [shape: f32[384,128], index: 10, kind: output, shape index: {1}]
  %11 = xla_tuple %s9, %s10
  %s12 = sld [smem:[#allocation0]]
  $region77: #{mlp_encoder_forward.1} parent=0
    _
  %s14 = ssub.s32 1, %s12
  %s15 = scalar_select 0, %s14, %s12
  loop: start=0, step=1, limit=5
  $region2: #{mlp_encoder_forward.1} parent=0 // loop_pre_header
    _
  $region3: #{mlp_encoder_forward.1} parent=0 // loop_header
    %s17 = sphi 0, %s21
    %p18 = scmp.ge.s32.totalorder %s17, 5
    %s27 = sphi 0, %s29
    %s30 = sphi 0, %s27
    %s31 = sphi 0, %s30
    %s47 = sphi 0, %s31
    %s51 = sphi 0, %s51
    %s53 = sphi 0, %s51
    %s54 = sphi 0, %s53
    %s68 = sphi 0, %s54
    %s72 = sphi 0, %s72
    %s74 = sphi 0, %s72
    %s75 = sphi 0, %s74
    %s89 = sphi 0, %s75
    %s93 = sphi 0, %s93
    %s95 = sphi 0, %s93
    %s96 = sphi 0, %s95
    %s110 = sphi 0, %s96
    %s114 = sphi 0, %s114
    %s116 = sphi 0, %s114
    %s117 = sphi 0, %s116
    %s131 = sphi 0, %s117
    %s135 = sphi 0, %s135
    %s137 = sphi 0, %s135
    %s138 = sphi 0, %s137
    %s152 = sphi 0, %s138
    %s156 = sphi 0, %s156
    %s158 = sphi 0, %s156
    %s159 = sphi 0, %s158
    %s173 = sphi 0, %s159
    %s177 = sphi 0, %s177
    %s179 = sphi 0, %s177
    %s180 = sphi 0, %s179
    %s194 = sphi 0, %s180
    %s198 = sphi 0, %s198
    %s200 = sphi 0, %s198
    %s201 = sphi 0, %s200
    %s215 = sphi 0, %s201
    %s221 = sphi 0, %s223
    %s224 = sphi 0, %s221
    %s225 = sphi 0, %s224
    %s241 = sphi 0, %s225
    %s247 = sphi 0, %s249
    %s250 = sphi 0, %s247
    %s251 = sphi 0, %s250
    %s267 = sphi 0, %s251
  $region4: #{mlp_encoder_forward.1} parent=0 // loop_header_branch
    %20 = sbr.rel (%p18) target = $region8
  $region5: #{mlp_encoder_forward.1} parent=0 // loop_body
    %s22 = ssub.s32 %s17, 1
    %s23 = ssub.s32 %s17, 2
    %s24 = sadd.s32 %s17, 1
    %s25 = ssub.s32 %s17, %s24
    %p26 = scmp.eq.s32.totalorder %s25, 0
    %s28 = sadd.s32 %s27, 1
    %s29 = scalar_select %p26, %s27, %s28
    %p32 = pneg %p26
    %p33 = scmp.eq.s32.totalorder %s17, 2
    %p34 = por %p32, %p33
    %p35 = scmp.ne.s32.totalorder %s27, %s30
    %p36 = scmp.eq.s32.totalorder %s17, 0
    %p37 = por %p35, %p36
    %p38 = scmp.ne.s32.totalorder %s27, %s30
    %p39 = scmp.eq.s32.totalorder %s22, 2
    %p40 = por %p38, %p39
    %p41 = scmp.ne.s32.totalorder %s30, %s31
    %p42 = scmp.eq.s32.totalorder %s22, 0
    %p43 = por %p41, %p42
    %p44 = scmp.ne.s32.totalorder %s30, %s31
    %p45 = scmp.eq.s32.totalorder %s23, 2
    %p46 = por %p44, %p45
    %p48 = scmp.ne.s32.totalorder %s31, %s47
    %p49 = scmp.eq.s32.totalorder %s23, 0
    %p50 = por %p48, %p49
    %s52 = sadd.s32 %s51, 1
    %p55 = scmp.eq.s32.totalorder %s17, 2
    %p56 = scmp.ne.s32.totalorder %s51, %s53
    %p57 = scmp.eq.s32.totalorder %s17, 0
    %p58 = por %p56, %p57
    %p59 = scmp.ne.s32.totalorder %s51, %s53
    %p60 = scmp.eq.s32.totalorder %s22, 2
    %p61 = por %p59, %p60
    %p62 = scmp.ne.s32.totalorder %s53, %s54
    %p63 = scmp.eq.s32.totalorder %s22, 0
    %p64 = por %p62, %p63
    %p65 = scmp.ne.s32.totalorder %s53, %s54
    %p66 = scmp.eq.s32.totalorder %s23, 2
    %p67 = por %p65, %p66
    %p69 = scmp.ne.s32.totalorder %s54, %s68
    %p70 = scmp.eq.s32.totalorder %s23, 0
    %p71 = por %p69, %p70
    %s73 = sadd.s32 %s72, 1
    %p76 = scmp.eq.s32.totalorder %s17, 2
    %p77 = scmp.ne.s32.totalorder %s72, %s74
    %p78 = scmp.eq.s32.totalorder %s17, 0
    %p79 = por %p77, %p78
    %p80 = scmp.ne.s32.totalorder %s72, %s74
    %p81 = scmp.eq.s32.totalorder %s22, 2
    %p82 = por %p80, %p81
    %p83 = scmp.ne.s32.totalorder %s74, %s75
    %p84 = scmp.eq.s32.totalorder %s22, 0
    %p85 = por %p83, %p84
    %p86 = scmp.ne.s32.totalorder %s74, %s75
    %p87 = scmp.eq.s32.totalorder %s23, 2
    %p88 = por %p86, %p87
    %p90 = scmp.ne.s32.totalorder %s75, %s89
    %p91 = scmp.eq.s32.totalorder %s23, 0
    %p92 = por %p90, %p91
    %s94 = sadd.s32 %s93, 1
    %p97 = scmp.eq.s32.totalorder %s17, 2
    %p98 = scmp.ne.s32.totalorder %s93, %s95
    %p99 = scmp.eq.s32.totalorder %s17, 0
    %p100 = por %p98, %p99
    %p101 = scmp.ne.s32.totalorder %s93, %s95
    %p102 = scmp.eq.s32.totalorder %s22, 2
    %p103 = por %p101, %p102
    %p104 = scmp.ne.s32.totalorder %s95, %s96
    %p105 = scmp.eq.s32.totalorder %s22, 0
    %p106 = por %p104, %p105
    %p107 = scmp.ne.s32.totalorder %s95, %s96
    %p108 = scmp.eq.s32.totalorder %s23, 2
    %p109 = por %p107, %p108
    %p111 = scmp.ne.s32.totalorder %s96, %s110
    %p112 = scmp.eq.s32.totalorder %s23, 0
    %p113 = por %p111, %p112
    %s115 = sadd.s32 %s114, 1
    %p118 = scmp.eq.s32.totalorder %s17, 2
    %p119 = scmp.ne.s32.totalorder %s114, %s116
    %p120 = scmp.eq.s32.totalorder %s17, 0
    %p121 = por %p119, %p120
    %p122 = scmp.ne.s32.totalorder %s114, %s116
    %p123 = scmp.eq.s32.totalorder %s22, 2
    %p124 = por %p122, %p123
    %p125 = scmp.ne.s32.totalorder %s116, %s117
    %p126 = scmp.eq.s32.totalorder %s22, 0
    %p127 = por %p125, %p126
    %p128 = scmp.ne.s32.totalorder %s116, %s117
    %p129 = scmp.eq.s32.totalorder %s23, 2
    %p130 = por %p128, %p129
    %p132 = scmp.ne.s32.totalorder %s117, %s131
    %p133 = scmp.eq.s32.totalorder %s23, 0
    %p134 = por %p132, %p133
    %s136 = sadd.s32 %s135, 1
    %p139 = scmp.eq.s32.totalorder %s17, 2
    %p140 = scmp.ne.s32.totalorder %s135, %s137
    %p141 = scmp.eq.s32.totalorder %s17, 0
    %p142 = por %p140, %p141
    %p143 = scmp.ne.s32.totalorder %s135, %s137
    %p144 = scmp.eq.s32.totalorder %s22, 2
    %p145 = por %p143, %p144
    %p146 = scmp.ne.s32.totalorder %s137, %s138
    %p147 = scmp.eq.s32.totalorder %s22, 0
    %p148 = por %p146, %p147
    %p149 = scmp.ne.s32.totalorder %s137, %s138
    %p150 = scmp.eq.s32.totalorder %s23, 2
    %p151 = por %p149, %p150
    %p153 = scmp.ne.s32.totalorder %s138, %s152
    %p154 = scmp.eq.s32.totalorder %s23, 0
    %p155 = por %p153, %p154
    %s157 = sadd.s32 %s156, 1
    %p160 = scmp.eq.s32.totalorder %s17, 2
    %p161 = scmp.ne.s32.totalorder %s156, %s158
    %p162 = scmp.eq.s32.totalorder %s17, 0
    %p163 = por %p161, %p162
    %p164 = scmp.ne.s32.totalorder %s156, %s158
    %p165 = scmp.eq.s32.totalorder %s22, 2
    %p166 = por %p164, %p165
    %p167 = scmp.ne.s32.totalorder %s158, %s159
    %p168 = scmp.eq.s32.totalorder %s22, 0
    %p169 = por %p167, %p168
    %p170 = scmp.ne.s32.totalorder %s158, %s159
    %p171 = scmp.eq.s32.totalorder %s23, 2
    %p172 = por %p170, %p171
    %p174 = scmp.ne.s32.totalorder %s159, %s173
    %p175 = scmp.eq.s32.totalorder %s23, 0
    %p176 = por %p174, %p175
    %s178 = sadd.s32 %s177, 1
    %p181 = scmp.eq.s32.totalorder %s17, 2
    %p182 = scmp.ne.s32.totalorder %s177, %s179
    %p183 = scmp.eq.s32.totalorder %s17, 0
    %p184 = por %p182, %p183
    %p185 = scmp.ne.s32.totalorder %s177, %s179
    %p186 = scmp.eq.s32.totalorder %s22, 2
    %p187 = por %p185, %p186
    %p188 = scmp.ne.s32.totalorder %s179, %s180
    %p189 = scmp.eq.s32.totalorder %s22, 0
    %p190 = por %p188, %p189
    %p191 = scmp.ne.s32.totalorder %s179, %s180
    %p192 = scmp.eq.s32.totalorder %s23, 2
    %p193 = por %p191, %p192
    %p195 = scmp.ne.s32.totalorder %s180, %s194
    %p196 = scmp.eq.s32.totalorder %s23, 0
    %p197 = por %p195, %p196
    %s199 = sadd.s32 %s198, 1
    %p202 = scmp.eq.s32.totalorder %s17, 2
    %p203 = scmp.ne.s32.totalorder %s198, %s200
    %p204 = scmp.eq.s32.totalorder %s17, 0
    %p205 = por %p203, %p204
    %p206 = scmp.ne.s32.totalorder %s198, %s200
    %p207 = scmp.eq.s32.totalorder %s22, 2
    %p208 = por %p206, %p207
    %p209 = scmp.ne.s32.totalorder %s200, %s201
    %p210 = scmp.eq.s32.totalorder %s22, 0
    %p211 = por %p209, %p210
    %p212 = scmp.ne.s32.totalorder %s200, %s201
    %p213 = scmp.eq.s32.totalorder %s23, 2
    %p214 = por %p212, %p213
    %p216 = scmp.ne.s32.totalorder %s201, %s215
    %p217 = scmp.eq.s32.totalorder %s23, 0
    %p218 = por %p216, %p217
    %s219 = ssub.s32 %s17, %s24
    %p220 = scmp.eq.s32.totalorder %s219, 0
    %s222 = sadd.s32 %s221, 1
    %s223 = scalar_select %p220, %s221, %s222
    %p226 = pneg %p220
    %p227 = scmp.eq.s32.totalorder %s17, 2
    %p228 = por %p226, %p227
    %p229 = scmp.ne.s32.totalorder %s221, %s224
    %p230 = scmp.eq.s32.totalorder %s17, 0
    %p231 = por %p229, %p230
    %p232 = scmp.ne.s32.totalorder %s221, %s224
    %p233 = scmp.eq.s32.totalorder %s22, 2
    %p234 = por %p232, %p233
    %p235 = scmp.ne.s32.totalorder %s224, %s225
    %p236 = scmp.eq.s32.totalorder %s22, 0
    %p237 = por %p235, %p236
    %p238 = scmp.ne.s32.totalorder %s224, %s225
    %p239 = scmp.eq.s32.totalorder %s23, 2
    %p240 = por %p238, %p239
    %p242 = scmp.ne.s32.totalorder %s225, %s241
    %p243 = scmp.eq.s32.totalorder %s23, 0
    %p244 = por %p242, %p243
    %s245 = ssub.s32 %s17, %s24
    %p246 = scmp.eq.s32.totalorder %s245, 0
    %s248 = sadd.s32 %s247, 1
    %s249 = scalar_select %p246, %s247, %s248
    %p252 = pneg %p246
    %p253 = scmp.eq.s32.totalorder %s17, 2
    %p254 = por %p252, %p253
    %p255 = scmp.ne.s32.totalorder %s247, %s250
    %p256 = scmp.eq.s32.totalorder %s17, 0
    %p257 = por %p255, %p256
    %p258 = scmp.ne.s32.totalorder %s247, %s250
    %p259 = scmp.eq.s32.totalorder %s22, 2
    %p260 = por %p258, %p259
    %p261 = scmp.ne.s32.totalorder %s250, %s251
    %p262 = scmp.eq.s32.totalorder %s22, 0
    %p263 = por %p261, %p262
    %p264 = scmp.ne.s32.totalorder %s250, %s251
    %p265 = scmp.eq.s32.totalorder %s23, 2
    %p266 = por %p264, %p265
    %p268 = scmp.ne.s32.totalorder %s251, %s267
    %p269 = scmp.eq.s32.totalorder %s23, 0
    %p270 = por %p268, %p269
    %p271 = scmp.le.s32.totalorder 1, %s17
    %p272 = scmp.lt.s32.totalorder %s17, 4
    %p273 = pnand %p271, %p272
    %p274 = pneg %p273
    // Predicated region
    $region9: #{mlp_encoder_forward.1} parent=5 // pred_check
      _
    $region10: #{mlp_encoder_forward.1} parent=5 // pred_check_branch
      %276 = sbr.rel (%p273) target = $region12
    $region11: #{mlp_encoder_forward.1} parent=5 // pred_region
      %s277 = ssub.s32 %s17, 1
      // Predicated region
      $region13: #{mlp_encoder_forward.1} parent=11 // pred_check
        %p278 = pneg %p64
      $region14: #{mlp_encoder_forward.1} parent=11 // pred_check_branch
        %280 = sbr.rel (%p278) target = $region16
      $region15: #{mlp_encoder_forward.1} parent=11 // pred_region
        _
      $region16: #{mlp_encoder_forward.1} parent=11 // pred_fallthru
        _
      // Predicated region
      $region17: #{mlp_encoder_forward.1} parent=11 // pred_check
        %p281 = pneg %p85
      $region18: #{mlp_encoder_forward.1} parent=11 // pred_check_branch
        %283 = sbr.rel (%p281) target = $region20
      $region19: #{mlp_encoder_forward.1} parent=11 // pred_region
        _
      $region20: #{mlp_encoder_forward.1} parent=11 // pred_fallthru
        _
      // Predicated region
      $region21: #{mlp_encoder_forward.1} parent=11 // pred_check
        %p284 = pneg %p106
      $region22: #{mlp_encoder_forward.1} parent=11 // pred_check_branch
        %286 = sbr.rel (%p284) target = $region24
      $region23: #{mlp_encoder_forward.1} parent=11 // pred_region
        _
      $region24: #{mlp_encoder_forward.1} parent=11 // pred_fallthru
        _
      // Predicated region
      $region25: #{mlp_encoder_forward.1} parent=11 // pred_check
        %p287 = pneg %p127
      $region26: #{mlp_encoder_forward.1} parent=11 // pred_check_branch
        %289 = sbr.rel (%p287) target = $region28
      $region27: #{mlp_encoder_forward.1} parent=11 // pred_region
        _
      $region28: #{mlp_encoder_forward.1} parent=11 // pred_fallthru
        _
      // Predicated region
      $region29: #{mlp_encoder_forward.1} parent=11 // pred_check
        %p290 = pneg %p148
      $region30: #{mlp_encoder_forward.1} parent=11 // pred_check_branch
        %292 = sbr.rel (%p290) target = $region32
      $region31: #{mlp_encoder_forward.1} parent=11 // pred_region
        _
      $region32: #{mlp_encoder_forward.1} parent=11 // pred_fallthru
        _
      // Predicated region
      $region33: #{mlp_encoder_forward.1} parent=11 // pred_check
        %p293 = pneg %p169
      $region34: #{mlp_encoder_forward.1} parent=11 // pred_check_branch
        %295 = sbr.rel (%p293) target = $region36
      $region35: #{mlp_encoder_forward.1} parent=11 // pred_region
        _
      $region36: #{mlp_encoder_forward.1} parent=11 // pred_fallthru
        _
      // Predicated region
      $region37: #{mlp_encoder_forward.1} parent=11 // pred_check
        %p296 = pneg %p190
      $region38: #{mlp_encoder_forward.1} parent=11 // pred_check_branch
        %298 = sbr.rel (%p296) target = $region40
      $region39: #{mlp_encoder_forward.1} parent=11 // pred_region
        _
      $region40: #{mlp_encoder_forward.1} parent=11 // pred_fallthru
        _
      // Predicated region
      $region41: #{mlp_encoder_forward.1} parent=11 // pred_check
        %p299 = pneg %p211
      $region42: #{mlp_encoder_forward.1} parent=11 // pred_check_branch
        %301 = sbr.rel (%p299) target = $region44
      $region43: #{mlp_encoder_forward.1} parent=11 // pred_region
        _
      $region44: #{mlp_encoder_forward.1} parent=11 // pred_fallthru
        _
    $region12: #{mlp_encoder_forward.1} parent=5 // pred_fallthru
      _
    %p302 = scmp.lt.s32.totalorder %s17, 3
    // Predicated region
    $region45: #{mlp_encoder_forward.1} parent=5 // pred_check
      %p303 = pneg %p302
    $region46: #{mlp_encoder_forward.1} parent=5 // pred_check_branch
      %305 = sbr.rel (%p303) target = $region48
    $region47: #{mlp_encoder_forward.1} parent=5 // pred_region
      // Predicated region
      $region49: #{mlp_encoder_forward.1} parent=47 // pred_check
        %p306 = pneg %p37
      $region50: #{mlp_encoder_forward.1} parent=47 // pred_check_branch
        %308 = sbr.rel (%p306) target = $region52
      $region51: #{mlp_encoder_forward.1} parent=47 // pred_region
        %s309 = smul.u32 16, %s17
        %p310 = scmp.lt.s32.totalorder %s309, 47
        %s311 = scalar_select %p310, %s309, 47
        %s312 = smul.addr %s311, 4
        %s313 = scalar_lea.vmem %s0, %s312
        %s314 = smul.u32 16, %s17
      $region52: #{mlp_encoder_forward.1} parent=47 // pred_fallthru
        _
    $region48: #{mlp_encoder_forward.1} parent=5 // pred_fallthru
      _
    %p315 = scmp.le.s32.totalorder 1, %s17
    %p316 = scmp.lt.s32.totalorder %s17, 4
    %p317 = pnand %p315, %p316
    %p318 = pneg %p317
    // Predicated region
    $region53: #{mlp_encoder_forward.1} parent=5 // pred_check
      _
    $region54: #{mlp_encoder_forward.1} parent=5 // pred_check_branch
      %320 = sbr.rel (%p317) target = $region56
    $region55: #{mlp_encoder_forward.1} parent=5 // pred_region
      %s321 = ssub.s32 %s17, 1
      %s322 = smul.u32 16, %s22
      %p323 = scmp.lt.s32.totalorder %s322, 47
      %s324 = scalar_select %p323, %s322, 47
      %s325 = smul.addr %s324, 4
      %s326 = scalar_lea.vmem %s0, %s325
      %p327 = pneg %p43
      %p328 = pneg %p40
      %p329 = pneg %p64
      %p330 = pneg %p61
      %p331 = pneg %p85
      %p332 = pneg %p82
      %p333 = pneg %p106
      %p334 = pneg %p103
      %p335 = pneg %p127
      %p336 = pneg %p124
      %p337 = pneg %p148
      %p338 = pneg %p145
      %p339 = pneg %p169
      %p340 = pneg %p166
      %p341 = pneg %p190
      %p342 = pneg %p187
      %p343 = pneg %p211
      %p344 = pneg %p208
      %p345 = pneg %p237
      %p346 = pneg %p234
      %s347 = smul.u32 16, %s22
      %p348 = scmp.lt.s32.totalorder %s347, 47
      %s349 = scalar_select %p348, %s347, 47
      %s350 = smul.addr %s349, 8
      %s351 = scalar_lea.vmem %s9, %s350
      %p352 = pneg %p263
      %p353 = pneg %p260
      %s354 = smul.u32 16, %s22
      %p355 = scmp.lt.s32.totalorder %s354, 47
      %s356 = scalar_select %p355, %s354, 47
      %s357 = smul.addr %s356, 8
      %s358 = scalar_lea.vmem %s10, %s357
      %s359 = smul.u32 16, %s22
      %p360 = scmp.lt.s32.totalorder %s359, 47
      %s361 = scalar_select %p360, %s359, 47
      %s362 = smul.addr %s361, 4
      %s363 = scalar_lea.vmem %s0, %s362
      %s364 = smul.u32 16, %s22
      %s365 = smul.u32 16, %s22
      %p366 = scmp.lt.s32.totalorder %s365, 47
      %s367 = scalar_select %p366, %s365, 47
      %s368 = smul.addr %s367, 8
      %s369 = scalar_lea.vmem %s9, %s368
      %s370 = smul.u32 16, %s22
      %s371 = smul.u32 16, %s22
      %p372 = scmp.lt.s32.totalorder %s371, 47
      %s373 = scalar_select %p372, %s371, 47
      %s374 = smul.addr %s373, 8
      %s375 = scalar_lea.vmem %s10, %s374
      %s376 = smul.u32 16, %s22
      %v378 = vld [vmem:[%s363] sm:$0xf]
      %v379 = vld [vmem:[%s363 + $0x4] sm:$0xf]
      %v380 = vld [vmem:[%s363 + $0x8] sm:$0xf]
      %v381 = vld [vmem:[%s363 + $0xc] sm:$0xf]
      %v382 = vld [vmem:[%s363 + $0x10] sm:$0xf]
      %v383 = vld [vmem:[%s363 + $0x14] sm:$0xf]
      %v384 = vld [vmem:[%s363 + $0x18] sm:$0xf]
      %v385 = vld [vmem:[%s363 + $0x1c] sm:$0xf]
      %v386 = vld [vmem:[%s363 + $0x20] sm:$0xf]
      %v387 = vld [vmem:[%s363 + $0x24] sm:$0xf]
      %v388 = vld [vmem:[%s363 + $0x28] sm:$0xf]
      %v389 = vld [vmem:[%s363 + $0x2c] sm:$0xf]
      %v390 = vld [vmem:[%s363 + $0x30] sm:$0xf]
      %v391 = vld [vmem:[%s363 + $0x34] sm:$0xf]
      %v392 = vld [vmem:[%s363 + $0x38] sm:$0xf]
      %v393 = vld [vmem:[%s363 + $0x3c] sm:$0xf]
      %v394 = vld [vmem:[%s1] sm:$0xf]
      %v395 = vld [vmem:[%s1 + $0x4] sm:$0xf]
      %v396 = vld [vmem:[%s1 + $0x8] sm:$0xf]
      %v397 = vld [vmem:[%s1 + $0xc] sm:$0xf]
      %v398 = vld [vmem:[%s1 + $0x10] sm:$0xf]
      %v399 = vld [vmem:[%s1 + $0x14] sm:$0xf]
      %v400 = vld [vmem:[%s1 + $0x18] sm:$0xf]
      %v401 = vld [vmem:[%s1 + $0x1c] sm:$0xf]
      %v402 = vld [vmem:[%s1 + $0x20] sm:$0xf]
      %v403 = vld [vmem:[%s1 + $0x24] sm:$0xf]
      %v404 = vld [vmem:[%s1 + $0x28] sm:$0xf]
      %v405 = vld [vmem:[%s1 + $0x2c] sm:$0xf]
      %v406 = vld [vmem:[%s1 + $0x30] sm:$0xf]
      %v407 = vld [vmem:[%s1 + $0x34] sm:$0xf]
      %v408 = vld [vmem:[%s1 + $0x38] sm:$0xf]
      %v409 = vld [vmem:[%s1 + $0x3c] sm:$0xf]
      %v410 = vld [vmem:[%s2] sm:$0x1]
      %v412 = vlaneseq
      %v413 = vshrl.u32 %v412, 7
      %v414 = vsub.s32 0, %v413
      %v415 = vrot.slane %v410, %v414
      %v433 = vunpack.c.l.b16 %v378
      %v434 = vunpack.c.l.b16 %v379
      %v435 = vunpack.c.l.b16 %v380
      %v436 = vunpack.c.l.b16 %v381
      %v437 = vunpack.c.l.b16 %v382
      %v438 = vunpack.c.l.b16 %v383
      %v439 = vunpack.c.l.b16 %v384
      %v440 = vunpack.c.l.b16 %v385
      %v441 = vunpack.c.l.b16 %v386
      %v442 = vunpack.c.l.b16 %v387
      %v443 = vunpack.c.l.b16 %v388
      %v444 = vunpack.c.l.b16 %v389
      %v445 = vunpack.c.l.b16 %v390
      %v446 = vunpack.c.l.b16 %v391
      %v447 = vunpack.c.l.b16 %v392
      %v448 = vunpack.c.l.b16 %v393
      %v449 = vpack.c.b16 %v434, %v433
      %v450 = vpack.c.b16 %v436, %v435
      %v451 = vpack.c.b16 %v438, %v437
      %v452 = vpack.c.b16 %v440, %v439
      %v453 = vpack.c.b16 %v442, %v441
      %v454 = vpack.c.b16 %v444, %v443
      %v455 = vpack.c.b16 %v446, %v445
      %v456 = vpack.c.b16 %v448, %v447
      %v481 = vunpack.c.l.b16 %v394
      %v482 = vunpack.c.l.b16 %v395
      %v483 = vunpack.c.l.b16 %v396
      %v484 = vunpack.c.l.b16 %v397
      %v485 = vunpack.c.l.b16 %v398
      %v486 = vunpack.c.l.b16 %v399
      %v487 = vunpack.c.l.b16 %v400
      %v488 = vunpack.c.l.b16 %v401
      %v489 = vunpack.c.l.b16 %v402
      %v490 = vunpack.c.l.b16 %v403
      %v491 = vunpack.c.l.b16 %v404
      %v492 = vunpack.c.l.b16 %v405
      %v493 = vunpack.c.l.b16 %v406
      %v494 = vunpack.c.l.b16 %v407
      %v495 = vunpack.c.l.b16 %v408
      %v496 = vunpack.c.l.b16 %v409
      %v497 = vpack.c.b16 %v482, %v481
      %v498 = vpack.c.b16 %v484, %v483
      %v499 = vpack.c.b16 %v486, %v485
      %v500 = vpack.c.b16 %v488, %v487
      %v501 = vpack.c.b16 %v490, %v489
      %v502 = vpack.c.b16 %v492, %v491
      %v503 = vpack.c.b16 %v494, %v493
      %v504 = vpack.c.b16 %v496, %v495
      %513 = vmatprep.subr.bf16.mxu0 0
      %514 = vmatpush1.bf16.msra.mxu0 %v504
      %515 = vmatprep.subr.bf16.mxu0 0
      %516 = vmatpush1.bf16.msra.mxu0 %v503
      %517 = vmatprep.subr.bf16.mxu0 0
      %518 = vmatpush1.bf16.msra.mxu0 %v502
      %519 = vmatprep.subr.bf16.mxu0 0
      %520 = vmatpush1.bf16.msra.mxu0 %v501
      %521 = vmatprep.subr.bf16.mxu0 0
      %522 = vmatpush1.bf16.msra.mxu0 %v500
      %523 = vmatprep.subr.bf16.mxu0 0
      %524 = vmatpush1.bf16.msra.mxu0 %v499
      %525 = vmatprep.subr.bf16.mxu0 0
      %526 = vmatpush1.bf16.msra.mxu0 %v498
      %527 = vmatprep.subr.bf16.mxu0 0
      %528 = vmatpush1.bf16.msra.mxu0 %v497
      %529 = vmatprep.subr.bf16.mxu0 0
      %530 = vmatpush2.bf16.msra.mxu0 0
      %531 = vmatprep.subr.bf16.mxu0 0
      %532 = vmatpush2.bf16.msra.mxu0 0
      %533 = vmatprep.subr.bf16.mxu0 0
      %534 = vmatpush2.bf16.msra.mxu0 0
      %535 = vmatprep.subr.bf16.mxu0 0
      %536 = vmatpush2.bf16.msra.mxu0 0
      %537 = vmatprep.subr.bf16.mxu0 0
      %538 = vmatpush2.bf16.msra.mxu0 0
      %539 = vmatprep.subr.bf16.mxu0 0
      %540 = vmatpush2.bf16.msra.mxu0 0
      %541 = vmatprep.subr.bf16.mxu0 0
      %542 = vmatpush2.bf16.msra.mxu0 0
      %543 = vmatprep.subr.bf16.mxu0 0
      %544 = vmatpush2.bf16.msra.mxu0 0
      %545 = vmatprep.mubr.bf16.mxu0 0
      %546 = vmatmul.mubr.bf16.gmra.mxu0 %v449
      %v547 = vpop.f32.mrf.mxu0
      %v548 = vadd.f32 %v415, %v547
      %v549 = vpop.f32.mrf.mxu0
      %v550 = vpop.f32.mrf.mxu0
      %v551 = vadd.f32 %v415, %v550
      %v552 = vpop.f32.mrf.mxu0
      %553 = vmatprep.mubr.bf16.mxu0 0
      %554 = vmatmul.mubr.bf16.gmra.mxu0 %v450
      %v555 = vpop.f32.mrf.mxu0
      %v556 = vadd.f32 %v415, %v555
      %v557 = vpop.f32.mrf.mxu0
      %v558 = vpop.f32.mrf.mxu0
      %v559 = vadd.f32 %v415, %v558
      %v560 = vpop.f32.mrf.mxu0
      %561 = vmatprep.mubr.bf16.mxu0 0
      %562 = vmatmul.mubr.bf16.gmra.mxu0 %v451
      %v563 = vpop.f32.mrf.mxu0
      %v564 = vadd.f32 %v415, %v563
      %v565 = vpop.f32.mrf.mxu0
      %v566 = vpop.f32.mrf.mxu0
      %v567 = vadd.f32 %v415, %v566
      %v568 = vpop.f32.mrf.mxu0
      %569 = vmatprep.mubr.bf16.mxu0 0
      %570 = vmatmul.mubr.bf16.gmra.mxu0 %v452
      %v571 = vpop.f32.mrf.mxu0
      %v572 = vadd.f32 %v415, %v571
      %v573 = vpop.f32.mrf.mxu0
      %v574 = vpop.f32.mrf.mxu0
      %v575 = vadd.f32 %v415, %v574
      %v576 = vpop.f32.mrf.mxu0
      %577 = vmatprep.mubr.bf16.mxu0 0
      %578 = vmatmul.mubr.bf16.gmra.mxu0 %v453
      %v579 = vpop.f32.mrf.mxu0
      %v580 = vadd.f32 %v415, %v579
      %v581 = vpop.f32.mrf.mxu0
      %v582 = vpop.f32.mrf.mxu0
      %v583 = vadd.f32 %v415, %v582
      %v584 = vpop.f32.mrf.mxu0
      %585 = vmatprep.mubr.bf16.mxu0 0
      %586 = vmatmul.mubr.bf16.gmra.mxu0 %v454
      %v587 = vpop.f32.mrf.mxu0
      %v588 = vadd.f32 %v415, %v587
      %v589 = vpop.f32.mrf.mxu0
      %v590 = vpop.f32.mrf.mxu0
      %v591 = vadd.f32 %v415, %v590
      %v592 = vpop.f32.mrf.mxu0
      %593 = vmatprep.mubr.bf16.mxu0 0
      %594 = vmatmul.mubr.bf16.gmra.mxu0 %v455
      %v595 = vpop.f32.mrf.mxu0
      %v596 = vadd.f32 %v415, %v595
      %v597 = vpop.f32.mrf.mxu0
      %v598 = vpop.f32.mrf.mxu0
      %v599 = vadd.f32 %v415, %v598
      %v600 = vpop.f32.mrf.mxu0
      %601 = vmatprep.mubr.bf16.mxu0 0
      %602 = vmatmul.mubr.bf16.gmra.mxu0 %v456
      %v603 = vpop.f32.mrf.mxu0
      %v604 = vadd.f32 %v415, %v603
      %v605 = vpop.f32.mrf.mxu0
      %v606 = vpop.f32.mrf.mxu0
      %v607 = vadd.f32 %v415, %v606
      %v608 = vpop.f32.mrf.mxu0
      %609 = vdwg.mxu0
      %v610 = vmax.f32 %v548, 0.0
      %v611 = vmax.f32 %v551, 0.0
      %v612 = vmax.f32 %v556, 0.0
      %v613 = vmax.f32 %v559, 0.0
      %v614 = vmax.f32 %v564, 0.0
      %v615 = vmax.f32 %v567, 0.0
      %v616 = vmax.f32 %v572, 0.0
      %v617 = vmax.f32 %v575, 0.0
      %v618 = vmax.f32 %v580, 0.0
      %v619 = vmax.f32 %v583, 0.0
      %v620 = vmax.f32 %v588, 0.0
      %v621 = vmax.f32 %v591, 0.0
      %v622 = vmax.f32 %v596, 0.0
      %v623 = vmax.f32 %v599, 0.0
      %v624 = vmax.f32 %v604, 0.0
      %v625 = vmax.f32 %v607, 0.0
      %v626 = vpack.c.bf16 %v611, %v610
      %v627 = vpack.c.bf16 %v613, %v612
      %v628 = vpack.c.bf16 %v615, %v614
      %v629 = vpack.c.bf16 %v617, %v616
      %v630 = vpack.c.bf16 %v619, %v618
      %v631 = vpack.c.bf16 %v621, %v620
      %v632 = vpack.c.bf16 %v623, %v622
      %v633 = vpack.c.bf16 %v625, %v624
      %v634 = vld [vmem:[%s3] sm:$0xf]
      %v635 = vld [vmem:[%s3 + $0x4] sm:$0xf]
      %v636 = vld [vmem:[%s3 + $0x8] sm:$0xf]
      %v637 = vld [vmem:[%s3 + $0xc] sm:$0xf]
      %v638 = vld [vmem:[%s3 + $0x10] sm:$0xf]
      %v639 = vld [vmem:[%s3 + $0x14] sm:$0xf]
      %v640 = vld [vmem:[%s3 + $0x18] sm:$0xf]
      %v641 = vld [vmem:[%s3 + $0x1c] sm:$0xf]
      %v642 = vld [vmem:[%s3 + $0x20] sm:$0xf]
      %v643 = vld [vmem:[%s3 + $0x24] sm:$0xf]
      %v644 = vld [vmem:[%s3 + $0x28] sm:$0xf]
      %v645 = vld [vmem:[%s3 + $0x2c] sm:$0xf]
      %v646 = vld [vmem:[%s3 + $0x30] sm:$0xf]
      %v647 = vld [vmem:[%s3 + $0x34] sm:$0xf]
      %v648 = vld [vmem:[%s3 + $0x38] sm:$0xf]
      %v649 = vld [vmem:[%s3 + $0x3c] sm:$0xf]
      %v650 = vld [vmem:[%s4] sm:$0x1]
      %v652 = vlaneseq
      %v653 = vshrl.u32 %v652, 7
      %v654 = vsub.s32 0, %v653
      %v655 = vrot.slane %v650, %v654
      %v673 = vunpack.c.l.b16 %v634
      %v674 = vunpack.c.l.b16 %v635
      %v675 = vunpack.c.l.b16 %v636
      %v676 = vunpack.c.l.b16 %v637
      %v677 = vunpack.c.l.b16 %v638
      %v678 = vunpack.c.l.b16 %v639
      %v679 = vunpack.c.l.b16 %v640
      %v680 = vunpack.c.l.b16 %v641
      %v681 = vunpack.c.l.b16 %v642
      %v682 = vunpack.c.l.b16 %v643
      %v683 = vunpack.c.l.b16 %v644
      %v684 = vunpack.c.l.b16 %v645
      %v685 = vunpack.c.l.b16 %v646
      %v686 = vunpack.c.l.b16 %v647
      %v687 = vunpack.c.l.b16 %v648
      %v688 = vunpack.c.l.b16 %v649
      %v689 = vpack.c.b16 %v674, %v673
      %v690 = vpack.c.b16 %v676, %v675
      %v691 = vpack.c.b16 %v678, %v677
      %v692 = vpack.c.b16 %v680, %v679
      %v693 = vpack.c.b16 %v682, %v681
      %v694 = vpack.c.b16 %v684, %v683
      %v695 = vpack.c.b16 %v686, %v685
      %v696 = vpack.c.b16 %v688, %v687
      %705 = vmatprep.subr.bf16.mxu0 0
      %706 = vmatpush1.bf16.msra.mxu0 %v696
      %707 = vmatprep.subr.bf16.mxu0 0
      %708 = vmatpush1.bf16.msra.mxu0 %v695
      %709 = vmatprep.subr.bf16.mxu0 0
      %710 = vmatpush1.bf16.msra.mxu0 %v694
      %711 = vmatprep.subr.bf16.mxu0 0
      %712 = vmatpush1.bf16.msra.mxu0 %v693
      %713 = vmatprep.subr.bf16.mxu0 0
      %714 = vmatpush1.bf16.msra.mxu0 %v692
      %715 = vmatprep.subr.bf16.mxu0 0
      %716 = vmatpush1.bf16.msra.mxu0 %v691
      %717 = vmatprep.subr.bf16.mxu0 0
      %718 = vmatpush1.bf16.msra.mxu0 %v690
      %719 = vmatprep.subr.bf16.mxu0 0
      %720 = vmatpush1.bf16.msra.mxu0 %v689
      %721 = vmatprep.subr.bf16.mxu0 0
      %722 = vmatpush2.bf16.msra.mxu0 0
      %723 = vmatprep.subr.bf16.mxu0 0
      %724 = vmatpush2.bf16.msra.mxu0 0
      %725 = vmatprep.subr.bf16.mxu0 0
      %726 = vmatpush2.bf16.msra.mxu0 0
      %727 = vmatprep.subr.bf16.mxu0 0
      %728 = vmatpush2.bf16.msra.mxu0 0
      %729 = vmatprep.subr.bf16.mxu0 0
      %730 = vmatpush2.bf16.msra.mxu0 0
      %731 = vmatprep.subr.bf16.mxu0 0
      %732 = vmatpush2.bf16.msra.mxu0 0
      %733 = vmatprep.subr.bf16.mxu0 0
      %734 = vmatpush2.bf16.msra.mxu0 0
      %735 = vmatprep.subr.bf16.mxu0 0
      %736 = vmatpush2.bf16.msra.mxu0 0
      %737 = vmatprep.mubr.bf16.mxu0 0
      %738 = vmatmul.mubr.bf16.gmra.mxu0 %v626
      %v739 = vpop.f32.mrf.mxu0
      %v740 = vadd.f32 %v655, %v739
      %v741 = vpop.f32.mrf.mxu0
      %v742 = vpop.f32.mrf.mxu0
      %v743 = vadd.f32 %v655, %v742
      %v744 = vpop.f32.mrf.mxu0
      %745 = vmatprep.mubr.bf16.mxu0 0
      %746 = vmatmul.mubr.bf16.gmra.mxu0 %v627
      %v747 = vpop.f32.mrf.mxu0
      %v748 = vadd.f32 %v655, %v747
      %v749 = vpop.f32.mrf.mxu0
      %v750 = vpop.f32.mrf.mxu0
      %v751 = vadd.f32 %v655, %v750
      %v752 = vpop.f32.mrf.mxu0
      %753 = vmatprep.mubr.bf16.mxu0 0
      %754 = vmatmul.mubr.bf16.gmra.mxu0 %v628
      %v755 = vpop.f32.mrf.mxu0
      %v756 = vadd.f32 %v655, %v755
      %v757 = vpop.f32.mrf.mxu0
      %v758 = vpop.f32.mrf.mxu0
      %v759 = vadd.f32 %v655, %v758
      %v760 = vpop.f32.mrf.mxu0
      %761 = vmatprep.mubr.bf16.mxu0 0
      %762 = vmatmul.mubr.bf16.gmra.mxu0 %v629
      %v763 = vpop.f32.mrf.mxu0
      %v764 = vadd.f32 %v655, %v763
      %v765 = vpop.f32.mrf.mxu0
      %v766 = vpop.f32.mrf.mxu0
      %v767 = vadd.f32 %v655, %v766
      %v768 = vpop.f32.mrf.mxu0
      %769 = vmatprep.mubr.bf16.mxu0 0
      %770 = vmatmul.mubr.bf16.gmra.mxu0 %v630
      %v771 = vpop.f32.mrf.mxu0
      %v772 = vadd.f32 %v655, %v771
      %v773 = vpop.f32.mrf.mxu0
      %v774 = vpop.f32.mrf.mxu0
      %v775 = vadd.f32 %v655, %v774
      %v776 = vpop.f32.mrf.mxu0
      %777 = vmatprep.mubr.bf16.mxu0 0
      %778 = vmatmul.mubr.bf16.gmra.mxu0 %v631
      %v779 = vpop.f32.mrf.mxu0
      %v780 = vadd.f32 %v655, %v779
      %v781 = vpop.f32.mrf.mxu0
      %v782 = vpop.f32.mrf.mxu0
      %v783 = vadd.f32 %v655, %v782
      %v784 = vpop.f32.mrf.mxu0
      %785 = vmatprep.mubr.bf16.mxu0 0
      %786 = vmatmul.mubr.bf16.gmra.mxu0 %v632
      %v787 = vpop.f32.mrf.mxu0
      %v788 = vadd.f32 %v655, %v787
      %v789 = vpop.f32.mrf.mxu0
      %v790 = vpop.f32.mrf.mxu0
      %v791 = vadd.f32 %v655, %v790
      %v792 = vpop.f32.mrf.mxu0
      %793 = vmatprep.mubr.bf16.mxu0 0
      %794 = vmatmul.mubr.bf16.gmra.mxu0 %v633
      %v795 = vpop.f32.mrf.mxu0
      %v796 = vadd.f32 %v655, %v795
      %v797 = vpop.f32.mrf.mxu0
      %v798 = vpop.f32.mrf.mxu0
      %v799 = vadd.f32 %v655, %v798
      %v800 = vpop.f32.mrf.mxu0
      %801 = vdwg.mxu0
      %v802 = vpack.c.bf16 %v743, %v740
      %v803 = vpack.c.bf16 %v751, %v748
      %v804 = vpack.c.bf16 %v759, %v756
      %v805 = vpack.c.bf16 %v767, %v764
      %v806 = vpack.c.bf16 %v775, %v772
      %v807 = vpack.c.bf16 %v783, %v780
      %v808 = vpack.c.bf16 %v791, %v788
      %v809 = vpack.c.bf16 %v799, %v796
      %v810 = vld [vmem:[%s5] sm:$0xf]
      %v811 = vld [vmem:[%s5 + $0x4] sm:$0xf]
      %v812 = vld [vmem:[%s5 + $0x8] sm:$0xf]
      %v813 = vld [vmem:[%s5 + $0xc] sm:$0xf]
      %v814 = vld [vmem:[%s5 + $0x10] sm:$0xf]
      %v815 = vld [vmem:[%s5 + $0x14] sm:$0xf]
      %v816 = vld [vmem:[%s5 + $0x18] sm:$0xf]
      %v817 = vld [vmem:[%s5 + $0x1c] sm:$0xf]
      %v818 = vld [vmem:[%s5 + $0x20] sm:$0xf]
      %v819 = vld [vmem:[%s5 + $0x24] sm:$0xf]
      %v820 = vld [vmem:[%s5 + $0x28] sm:$0xf]
      %v821 = vld [vmem:[%s5 + $0x2c] sm:$0xf]
      %v822 = vld [vmem:[%s5 + $0x30] sm:$0xf]
      %v823 = vld [vmem:[%s5 + $0x34] sm:$0xf]
      %v824 = vld [vmem:[%s5 + $0x38] sm:$0xf]
      %v825 = vld [vmem:[%s5 + $0x3c] sm:$0xf]
      %v826 = vld [vmem:[%s6] sm:$0x1]
      %v828 = vlaneseq
      %v829 = vshrl.u32 %v828, 7
      %v830 = vsub.s32 0, %v829
      %v831 = vrot.slane %v826, %v830
      %v849 = vunpack.c.l.b16 %v810
      %v850 = vunpack.c.l.b16 %v811
      %v851 = vunpack.c.l.b16 %v812
      %v852 = vunpack.c.l.b16 %v813
      %v853 = vunpack.c.l.b16 %v814
      %v854 = vunpack.c.l.b16 %v815
      %v855 = vunpack.c.l.b16 %v816
      %v856 = vunpack.c.l.b16 %v817
      %v857 = vunpack.c.l.b16 %v818
      %v858 = vunpack.c.l.b16 %v819
      %v859 = vunpack.c.l.b16 %v820
      %v860 = vunpack.c.l.b16 %v821
      %v861 = vunpack.c.l.b16 %v822
      %v862 = vunpack.c.l.b16 %v823
      %v863 = vunpack.c.l.b16 %v824
      %v864 = vunpack.c.l.b16 %v825
      %v865 = vpack.c.b16 %v850, %v849
      %v866 = vpack.c.b16 %v852, %v851
      %v867 = vpack.c.b16 %v854, %v853
      %v868 = vpack.c.b16 %v856, %v855
      %v869 = vpack.c.b16 %v858, %v857
      %v870 = vpack.c.b16 %v860, %v859
      %v871 = vpack.c.b16 %v862, %v861
      %v872 = vpack.c.b16 %v864, %v863
      %881 = vmatprep.subr.bf16.mxu0 0
      %882 = vmatpush1.bf16.msra.mxu0 %v872
      %883 = vmatprep.subr.bf16.mxu0 0
      %884 = vmatpush1.bf16.msra.mxu0 %v871
      %885 = vmatprep.subr.bf16.mxu0 0
      %886 = vmatpush1.bf16.msra.mxu0 %v870
      %887 = vmatprep.subr.bf16.mxu0 0
      %888 = vmatpush1.bf16.msra.mxu0 %v869
      %889 = vmatprep.subr.bf16.mxu0 0
      %890 = vmatpush1.bf16.msra.mxu0 %v868
      %891 = vmatprep.subr.bf16.mxu0 0
      %892 = vmatpush1.bf16.msra.mxu0 %v867
      %893 = vmatprep.subr.bf16.mxu0 0
      %894 = vmatpush1.bf16.msra.mxu0 %v866
      %895 = vmatprep.subr.bf16.mxu0 0
      %896 = vmatpush1.bf16.msra.mxu0 %v865
      %897 = vmatprep.subr.bf16.mxu0 0
      %898 = vmatpush2.bf16.msra.mxu0 0
      %899 = vmatprep.subr.bf16.mxu0 0
      %900 = vmatpush2.bf16.msra.mxu0 0
      %901 = vmatprep.subr.bf16.mxu0 0
      %902 = vmatpush2.bf16.msra.mxu0 0
      %903 = vmatprep.subr.bf16.mxu0 0
      %904 = vmatpush2.bf16.msra.mxu0 0
      %905 = vmatprep.subr.bf16.mxu0 0
      %906 = vmatpush2.bf16.msra.mxu0 0
      %907 = vmatprep.subr.bf16.mxu0 0
      %908 = vmatpush2.bf16.msra.mxu0 0
      %909 = vmatprep.subr.bf16.mxu0 0
      %910 = vmatpush2.bf16.msra.mxu0 0
      %911 = vmatprep.subr.bf16.mxu0 0
      %912 = vmatpush2.bf16.msra.mxu0 0
      %913 = vmatprep.mubr.bf16.mxu0 0
      %914 = vmatmul.mubr.bf16.gmra.mxu0 %v802
      %v915 = vpop.f32.mrf.mxu0
      %v916 = vadd.f32 %v831, %v915
      %v917 = vpop.f32.mrf.mxu0
      %v918 = vpop.f32.mrf.mxu0
      %v919 = vadd.f32 %v831, %v918
      %v920 = vpop.f32.mrf.mxu0
      %921 = vmatprep.mubr.bf16.mxu0 0
      %922 = vmatmul.mubr.bf16.gmra.mxu0 %v803
      %v923 = vpop.f32.mrf.mxu0
      %v924 = vadd.f32 %v831, %v923
      %v925 = vpop.f32.mrf.mxu0
      %v926 = vpop.f32.mrf.mxu0
      %v927 = vadd.f32 %v831, %v926
      %v928 = vpop.f32.mrf.mxu0
      %929 = vmatprep.mubr.bf16.mxu0 0
      %930 = vmatmul.mubr.bf16.gmra.mxu0 %v804
      %v931 = vpop.f32.mrf.mxu0
      %v932 = vadd.f32 %v831, %v931
      %v933 = vpop.f32.mrf.mxu0
      %v934 = vpop.f32.mrf.mxu0
      %v935 = vadd.f32 %v831, %v934
      %v936 = vpop.f32.mrf.mxu0
      %937 = vmatprep.mubr.bf16.mxu0 0
      %938 = vmatmul.mubr.bf16.gmra.mxu0 %v805
      %v939 = vpop.f32.mrf.mxu0
      %v940 = vadd.f32 %v831, %v939
      %v941 = vpop.f32.mrf.mxu0
      %v942 = vpop.f32.mrf.mxu0
      %v943 = vadd.f32 %v831, %v942
      %v944 = vpop.f32.mrf.mxu0
      %945 = vmatprep.mubr.bf16.mxu0 0
      %946 = vmatmul.mubr.bf16.gmra.mxu0 %v806
      %v947 = vpop.f32.mrf.mxu0
      %v948 = vadd.f32 %v831, %v947
      %v949 = vpop.f32.mrf.mxu0
      %v950 = vpop.f32.mrf.mxu0
      %v951 = vadd.f32 %v831, %v950
      %v952 = vpop.f32.mrf.mxu0
      %953 = vmatprep.mubr.bf16.mxu0 0
      %954 = vmatmul.mubr.bf16.gmra.mxu0 %v807
      %v955 = vpop.f32.mrf.mxu0
      %v956 = vadd.f32 %v831, %v955
      %v957 = vpop.f32.mrf.mxu0
      %v958 = vpop.f32.mrf.mxu0
      %v959 = vadd.f32 %v831, %v958
      %v960 = vpop.f32.mrf.mxu0
      %961 = vmatprep.mubr.bf16.mxu0 0
      %962 = vmatmul.mubr.bf16.gmra.mxu0 %v808
      %v963 = vpop.f32.mrf.mxu0
      %v964 = vadd.f32 %v831, %v963
      %v965 = vpop.f32.mrf.mxu0
      %v966 = vpop.f32.mrf.mxu0
      %v967 = vadd.f32 %v831, %v966
      %v968 = vpop.f32.mrf.mxu0
      %969 = vmatprep.mubr.bf16.mxu0 0
      %970 = vmatmul.mubr.bf16.gmra.mxu0 %v809
      %v971 = vpop.f32.mrf.mxu0
      %v972 = vadd.f32 %v831, %v971
      %v973 = vpop.f32.mrf.mxu0
      %v974 = vpop.f32.mrf.mxu0
      %v975 = vadd.f32 %v831, %v974
      %v976 = vpop.f32.mrf.mxu0
      %977 = vdwg.mxu0
      %v978 = vmax.f32 %v916, 0.0
      %v979 = vmax.f32 %v919, 0.0
      %v980 = vmax.f32 %v924, 0.0
      %v981 = vmax.f32 %v927, 0.0
      %v982 = vmax.f32 %v932, 0.0
      %v983 = vmax.f32 %v935, 0.0
      %v984 = vmax.f32 %v940, 0.0
      %v985 = vmax.f32 %v943, 0.0
      %v986 = vmax.f32 %v948, 0.0
      %v987 = vmax.f32 %v951, 0.0
      %v988 = vmax.f32 %v956, 0.0
      %v989 = vmax.f32 %v959, 0.0
      %v990 = vmax.f32 %v964, 0.0
      %v991 = vmax.f32 %v967, 0.0
      %v992 = vmax.f32 %v972, 0.0
      %v993 = vmax.f32 %v975, 0.0
      %v994 = vpack.c.bf16 %v979, %v978
      %v995 = vpack.c.bf16 %v981, %v980
      %v996 = vpack.c.bf16 %v983, %v982
      %v997 = vpack.c.bf16 %v985, %v984
      %v998 = vpack.c.bf16 %v987, %v986
      %v999 = vpack.c.bf16 %v989, %v988
      %v1000 = vpack.c.bf16 %v991, %v990
      %v1001 = vpack.c.bf16 %v993, %v992
      %v1002 = vld [vmem:[%s7] sm:$0xf]
      %v1003 = vld [vmem:[%s7 + $0x4] sm:$0xf]
      %v1004 = vld [vmem:[%s7 + $0x8] sm:$0xf]
      %v1005 = vld [vmem:[%s7 + $0xc] sm:$0xf]
      %v1006 = vld [vmem:[%s7 + $0x10] sm:$0xf]
      %v1007 = vld [vmem:[%s7 + $0x14] sm:$0xf]
      %v1008 = vld [vmem:[%s7 + $0x18] sm:$0xf]
      %v1009 = vld [vmem:[%s7 + $0x1c] sm:$0xf]
      %v1010 = vld [vmem:[%s7 + $0x20] sm:$0xf]
      %v1011 = vld [vmem:[%s7 + $0x24] sm:$0xf]
      %v1012 = vld [vmem:[%s7 + $0x28] sm:$0xf]
      %v1013 = vld [vmem:[%s7 + $0x2c] sm:$0xf]
      %v1014 = vld [vmem:[%s7 + $0x30] sm:$0xf]
      %v1015 = vld [vmem:[%s7 + $0x34] sm:$0xf]
      %v1016 = vld [vmem:[%s7 + $0x38] sm:$0xf]
      %v1017 = vld [vmem:[%s7 + $0x3c] sm:$0xf]
      %v1018 = vld [vmem:[%s8] sm:$0x1]
      %v1020 = vlaneseq
      %v1021 = vshrl.u32 %v1020, 7
      %v1022 = vsub.s32 0, %v1021
      %v1023 = vrot.slane %v1018, %v1022
      %v1041 = vunpack.c.l.b16 %v1002
      %v1042 = vunpack.c.l.b16 %v1003
      %v1043 = vunpack.c.l.b16 %v1004
      %v1044 = vunpack.c.l.b16 %v1005
      %v1045 = vunpack.c.l.b16 %v1006
      %v1046 = vunpack.c.l.b16 %v1007
      %v1047 = vunpack.c.l.b16 %v1008
      %v1048 = vunpack.c.l.b16 %v1009
      %v1049 = vunpack.c.l.b16 %v1010
      %v1050 = vunpack.c.l.b16 %v1011
      %v1051 = vunpack.c.l.b16 %v1012
      %v1052 = vunpack.c.l.b16 %v1013
      %v1053 = vunpack.c.l.b16 %v1014
      %v1054 = vunpack.c.l.b16 %v1015
      %v1055 = vunpack.c.l.b16 %v1016
      %v1056 = vunpack.c.l.b16 %v1017
      %v1057 = vpack.c.b16 %v1042, %v1041
      %v1058 = vpack.c.b16 %v1044, %v1043
      %v1059 = vpack.c.b16 %v1046, %v1045
      %v1060 = vpack.c.b16 %v1048, %v1047
      %v1061 = vpack.c.b16 %v1050, %v1049
      %v1062 = vpack.c.b16 %v1052, %v1051
      %v1063 = vpack.c.b16 %v1054, %v1053
      %v1064 = vpack.c.b16 %v1056, %v1055
      %1073 = vmatprep.subr.bf16.mxu0 0
      %1074 = vmatpush1.bf16.msra.mxu0 %v1064
      %1075 = vmatprep.subr.bf16.mxu0 0
      %1076 = vmatpush1.bf16.msra.mxu0 %v1063
      %1077 = vmatprep.subr.bf16.mxu0 0
      %1078 = vmatpush1.bf16.msra.mxu0 %v1062
      %1079 = vmatprep.subr.bf16.mxu0 0
      %1080 = vmatpush1.bf16.msra.mxu0 %v1061
      %1081 = vmatprep.subr.bf16.mxu0 0
      %1082 = vmatpush1.bf16.msra.mxu0 %v1060
      %1083 = vmatprep.subr.bf16.mxu0 0
      %1084 = vmatpush1.bf16.msra.mxu0 %v1059
      %1085 = vmatprep.subr.bf16.mxu0 0
      %1086 = vmatpush1.bf16.msra.mxu0 %v1058
      %1087 = vmatprep.subr.bf16.mxu0 0
      %1088 = vmatpush1.bf16.msra.mxu0 %v1057
      %1089 = vmatprep.subr.bf16.mxu0 0
      %1090 = vmatpush2.bf16.msra.mxu0 0
      %1091 = vmatprep.subr.bf16.mxu0 0
      %1092 = vmatpush2.bf16.msra.mxu0 0
      %1093 = vmatprep.subr.bf16.mxu0 0
      %1094 = vmatpush2.bf16.msra.mxu0 0
      %1095 = vmatprep.subr.bf16.mxu0 0
      %1096 = vmatpush2.bf16.msra.mxu0 0
      %1097 = vmatprep.subr.bf16.mxu0 0
      %1098 = vmatpush2.bf16.msra.mxu0 0
      %1099 = vmatprep.subr.bf16.mxu0 0
      %1100 = vmatpush2.bf16.msra.mxu0 0
      %1101 = vmatprep.subr.bf16.mxu0 0
      %1102 = vmatpush2.bf16.msra.mxu0 0
      %1103 = vmatprep.subr.bf16.mxu0 0
      %1104 = vmatpush2.bf16.msra.mxu0 0
      %1105 = vmatprep.mubr.bf16.mxu0 0
      %1106 = vmatmul.mubr.bf16.gmra.mxu0 %v994
      %v1107 = vpop.f32.mrf.mxu0
      %v1108 = vadd.f32 %v1023, %v1107
      %v1109 = vpop.f32.mrf.mxu0
      %v1110 = vpop.f32.mrf.mxu0
      %v1111 = vadd.f32 %v1023, %v1110
      %v1112 = vpop.f32.mrf.mxu0
      %1113 = vmatprep.mubr.bf16.mxu0 0
      %1114 = vmatmul.mubr.bf16.gmra.mxu0 %v995
      %v1115 = vpop.f32.mrf.mxu0
      %v1116 = vadd.f32 %v1023, %v1115
      %v1117 = vpop.f32.mrf.mxu0
      %v1118 = vpop.f32.mrf.mxu0
      %v1119 = vadd.f32 %v1023, %v1118
      %v1120 = vpop.f32.mrf.mxu0
      %1121 = vmatprep.mubr.bf16.mxu0 0
      %1122 = vmatmul.mubr.bf16.gmra.mxu0 %v996
      %v1123 = vpop.f32.mrf.mxu0
      %v1124 = vadd.f32 %v1023, %v1123
      %v1125 = vpop.f32.mrf.mxu0
      %v1126 = vpop.f32.mrf.mxu0
      %v1127 = vadd.f32 %v1023, %v1126
      %v1128 = vpop.f32.mrf.mxu0
      %1129 = vmatprep.mubr.bf16.mxu0 0
      %1130 = vmatmul.mubr.bf16.gmra.mxu0 %v997
      %v1131 = vpop.f32.mrf.mxu0
      %v1132 = vadd.f32 %v1023, %v1131
      %v1133 = vpop.f32.mrf.mxu0
      %v1134 = vpop.f32.mrf.mxu0
      %v1135 = vadd.f32 %v1023, %v1134
      %v1136 = vpop.f32.mrf.mxu0
      %1137 = vmatprep.mubr.bf16.mxu0 0
      %1138 = vmatmul.mubr.bf16.gmra.mxu0 %v998
      %v1139 = vpop.f32.mrf.mxu0
      %v1140 = vadd.f32 %v1023, %v1139
      %v1141 = vpop.f32.mrf.mxu0
      %v1142 = vpop.f32.mrf.mxu0
      %v1143 = vadd.f32 %v1023, %v1142
      %v1144 = vpop.f32.mrf.mxu0
      %1145 = vmatprep.mubr.bf16.mxu0 0
      %1146 = vmatmul.mubr.bf16.gmra.mxu0 %v999
      %v1147 = vpop.f32.mrf.mxu0
      %v1148 = vadd.f32 %v1023, %v1147
      %v1149 = vpop.f32.mrf.mxu0
      %v1150 = vpop.f32.mrf.mxu0
      %v1151 = vadd.f32 %v1023, %v1150
      %v1152 = vpop.f32.mrf.mxu0
      %1153 = vmatprep.mubr.bf16.mxu0 0
      %1154 = vmatmul.mubr.bf16.gmra.mxu0 %v1000
      %v1155 = vpop.f32.mrf.mxu0
      %v1156 = vadd.f32 %v1023, %v1155
      %v1157 = vpop.f32.mrf.mxu0
      %v1158 = vpop.f32.mrf.mxu0
      %v1159 = vadd.f32 %v1023, %v1158
      %v1160 = vpop.f32.mrf.mxu0
      %1161 = vmatprep.mubr.bf16.mxu0 0
      %1162 = vmatmul.mubr.bf16.gmra.mxu0 %v1001
      %v1163 = vpop.f32.mrf.mxu0
      %v1164 = vadd.f32 %v1023, %v1163
      %v1165 = vpop.f32.mrf.mxu0
      %v1166 = vpop.f32.mrf.mxu0
      %v1167 = vadd.f32 %v1023, %v1166
      %v1168 = vpop.f32.mrf.mxu0
      %1169 = vdwg.mxu0
      %1170 = vst [vmem:[%s369] sm:$0xff] %v740
      %1171 = vst [vmem:[%s369 + $0x8] sm:$0xff] %v743
      %1172 = vst [vmem:[%s369 + $0x10] sm:$0xff] %v748
      %1173 = vst [vmem:[%s369 + $0x18] sm:$0xff] %v751
      %1174 = vst [vmem:[%s369 + $0x20] sm:$0xff] %v756
      %1175 = vst [vmem:[%s369 + $0x28] sm:$0xff] %v759
      %1176 = vst [vmem:[%s369 + $0x30] sm:$0xff] %v764
      %1177 = vst [vmem:[%s369 + $0x38] sm:$0xff] %v767
      %1178 = vst [vmem:[%s369 + $0x40] sm:$0xff] %v772
      %1179 = vst [vmem:[%s369 + $0x48] sm:$0xff] %v775
      %1180 = vst [vmem:[%s369 + $0x50] sm:$0xff] %v780
      %1181 = vst [vmem:[%s369 + $0x58] sm:$0xff] %v783
      %1182 = vst [vmem:[%s369 + $0x60] sm:$0xff] %v788
      %1183 = vst [vmem:[%s369 + $0x68] sm:$0xff] %v791
      %1184 = vst [vmem:[%s369 + $0x70] sm:$0xff] %v796
      %1185 = vst [vmem:[%s369 + $0x78] sm:$0xff] %v799
      %1186 = vst [vmem:[%s375] sm:$0xff] %v1108
      %1187 = vst [vmem:[%s375 + $0x8] sm:$0xff] %v1111
      %1188 = vst [vmem:[%s375 + $0x10] sm:$0xff] %v1116
      %1189 = vst [vmem:[%s375 + $0x18] sm:$0xff] %v1119
      %1190 = vst [vmem:[%s375 + $0x20] sm:$0xff] %v1124
      %1191 = vst [vmem:[%s375 + $0x28] sm:$0xff] %v1127
      %1192 = vst [vmem:[%s375 + $0x30] sm:$0xff] %v1132
      %1193 = vst [vmem:[%s375 + $0x38] sm:$0xff] %v1135
      %1194 = vst [vmem:[%s375 + $0x40] sm:$0xff] %v1140
      %1195 = vst [vmem:[%s375 + $0x48] sm:$0xff] %v1143
      %1196 = vst [vmem:[%s375 + $0x50] sm:$0xff] %v1148
      %1197 = vst [vmem:[%s375 + $0x58] sm:$0xff] %v1151
      %1198 = vst [vmem:[%s375 + $0x60] sm:$0xff] %v1156
      %1199 = vst [vmem:[%s375 + $0x68] sm:$0xff] %v1159
      %1200 = vst [vmem:[%s375 + $0x70] sm:$0xff] %v1164
      %1201 = vst [vmem:[%s375 + $0x78] sm:$0xff] %v1167
      %s1202 = smul.u32 16, %s22
      %p1203 = scmp.lt.s32.totalorder %s1202, 47
      %s1204 = scalar_select %p1203, %s1202, 47
      %s1205 = smul.addr %s1204, 8
      %s1206 = scalar_lea.vmem %s9, %s1205
      %s1207 = smul.u32 16, %s22
      %p1208 = scmp.lt.s32.totalorder %s1207, 47
      %s1209 = scalar_select %p1208, %s1207, 47
      %s1210 = smul.addr %s1209, 8
      %s1211 = scalar_lea.vmem %s10, %s1210
      // Predicated region
      $region57: #{mlp_encoder_forward.1} parent=55 // pred_check
        %p1212 = pneg %p234
      $region58: #{mlp_encoder_forward.1} parent=55 // pred_check_branch
        %1214 = sbr.rel (%p1212) target = $region60
      $region59: #{mlp_encoder_forward.1} parent=55 // pred_region
        %s1215 = smul.u32 16, %s22
      $region60: #{mlp_encoder_forward.1} parent=55 // pred_fallthru
        _
      // Predicated region
      $region61: #{mlp_encoder_forward.1} parent=55 // pred_check
        %p1216 = pneg %p260
      $region62: #{mlp_encoder_forward.1} parent=55 // pred_check_branch
        %1218 = sbr.rel (%p1216) target = $region64
      $region63: #{mlp_encoder_forward.1} parent=55 // pred_region
        %s1219 = smul.u32 16, %s22
      $region64: #{mlp_encoder_forward.1} parent=55 // pred_fallthru
        _
    $region56: #{mlp_encoder_forward.1} parent=5 // pred_fallthru
      _
    %p1220 = scmp.le.s32.totalorder 2, %s17
    // Predicated region
    $region65: #{mlp_encoder_forward.1} parent=5 // pred_check
      %p1221 = pneg %p1220
    $region66: #{mlp_encoder_forward.1} parent=5 // pred_check_branch
      %1223 = sbr.rel (%p1221) target = $region68
    $region67: #{mlp_encoder_forward.1} parent=5 // pred_region
      %s1224 = ssub.s32 %s17, 2
      // Predicated region
      $region69: #{mlp_encoder_forward.1} parent=67 // pred_check
        %p1225 = pneg %p240
      $region70: #{mlp_encoder_forward.1} parent=67 // pred_check_branch
        %1227 = sbr.rel (%p1225) target = $region72
      $region71: #{mlp_encoder_forward.1} parent=67 // pred_region
        %s1228 = smul.u32 16, %s23
        %p1229 = scmp.lt.s32.totalorder %s1228, 47
        %s1230 = scalar_select %p1229, %s1228, 47
        %s1231 = smul.addr %s1230, 8
        %s1232 = scalar_lea.vmem %s9, %s1231
      $region72: #{mlp_encoder_forward.1} parent=67 // pred_fallthru
        _
      // Predicated region
      $region73: #{mlp_encoder_forward.1} parent=67 // pred_check
        %p1233 = pneg %p266
      $region74: #{mlp_encoder_forward.1} parent=67 // pred_check_branch
        %1235 = sbr.rel (%p1233) target = $region76
      $region75: #{mlp_encoder_forward.1} parent=67 // pred_region
        %s1236 = smul.u32 16, %s23
        %p1237 = scmp.lt.s32.totalorder %s1236, 47
        %s1238 = scalar_select %p1237, %s1236, 47
        %s1239 = smul.addr %s1238, 8
        %s1240 = scalar_lea.vmem %s10, %s1239
      $region76: #{mlp_encoder_forward.1} parent=67 // pred_fallthru
        _
    $region68: #{mlp_encoder_forward.1} parent=5 // pred_fallthru
      _
  $region6: #{mlp_encoder_forward.1} parent=0 // loop_footer
    %s21 = sadd.s32 1, %s17
  $region7: #{mlp_encoder_forward.1} parent=0 // loop_footer_branch
    %16 = sbr.rel target = $region3
  $region8: #{mlp_encoder_forward.1} parent=0 // loop_exit
    _

</llo_original>
